<compile_context>
chip_gen: v7x
topology: tpu7x:2x2x1
jax: 0.10.0
libtpu: 0.0.40
codegen_flags: <defaults>
</compile_context>

<pallas_src>
import functools
import math

import jax
import jax.numpy as jnp
from jax.experimental import pallas as pl
from jax.experimental.pallas import tpu as pltpu

_LANE = 128
_SUB = 8
_MAX_TILE_ROWS = 2048          # 2048 rows * 128 lanes * 4 B = 1 MiB / f32 block
_NEG_BIG = -1.0e30             # running-max init: exp()->0, (*0.0)->0.0


# ----------------------------------------------------------------------------
# helpers
# ----------------------------------------------------------------------------
def _cdiv(a, b):
    return (a + b - 1) // b


def _round_up(x, m):
    return ((x + m - 1) // m) * m


def _sublane(dtype):
    # native sublane packing: 8 for 4-byte, 16 for 2-byte, 32 for 1-byte dtypes
    return max(_SUB, 32 // int(jnp.dtype(dtype).itemsize))


def _pad_neg_value(dtype):
    # finite, dtype-representable, very negative: exp underflows to 0 and
    # (* 0.0) stays 0.0, so padding never perturbs the reductions.
    return float(jnp.finfo(dtype).min) / 2.0


def _vmem_limit_bytes():
    # per-generation VMEM budget: v5e/v6e have 128 MiB/TC, v7x only 64 MiB.
    try:
        info = pltpu.get_tpu_info()
        cap = int(getattr(info, "vmem_capacity_bytes", 0)
                  or getattr(info, "vmem_bytes", 0) or 0)
        if cap > 0:
            return min(cap // 2, 48 * 1024 * 1024)
    except Exception:
        pass
    return 32 * 1024 * 1024


# ----------------------------------------------------------------------------
# MSE path: sum over stages of nn.MSELoss (mean reduction)
# ----------------------------------------------------------------------------
def _sse_kernel(*args, n_stages, tile_r, r_rows):
    preds = args[:n_stages]
    tgt_ref = args[n_stages]
    out_ref = args[n_stages + 1]          # (1, n_stages, 8, 128)

    k = pl.program_id(0)
    need_mask = (r_rows % tile_r) != 0    # only when wrapper could not pre-pad
    if need_mask:
        rows_valid = r_rows - k * tile_r
        row_ids = jax.lax.broadcasted_iota(jnp.int32, (tile_r, _LANE), 0)
        mask = row_ids < rows_valid

    t = tgt_ref[...].astype(jnp.float32)
    for si in range(n_stages):
        d = preds[si][...].astype(jnp.float32) - t
        if need_mask:
            d = jnp.where(mask, d, 0.0)
        sq = d * d
        # two-level reduce: rows -> one (8,128) partial slab (pure VPU adds)
        out_ref[0, si] = jnp.sum(
            sq.reshape(tile_r // _SUB, _SUB, _LANE), axis=0)


def _pick_mse_tile_rows(rows_needed, itemsizes, sub, vmem_limit):
    # all (n_stages+1) inputs are double-buffered; budget half of VMEM for them
    per_row_bytes = 2 * _LANE * sum(itemsizes)
    budget = vmem_limit // 2
    cap = max(sub, min(_MAX_TILE_ROWS,
                       (budget // per_row_bytes) // sub * sub))
    tile_r = min(cap, max(_round_up(rows_needed, sub), sub))
    return max(tile_r, sub)


def cpm_loss_mse(outs, target):
    n_elem = math.prod(target.shape)
    dtypes = [target.dtype] + [o.dtype for o in outs]
    itemsizes = [int(jnp.dtype(d).itemsize) for d in dtypes]
    sub = max(_sublane(d) for d in dtypes)
    vmem_limit = _vmem_limit_bytes()

    rows = _cdiv(n_elem, _LANE)
    tile_r = _pick_mse_tile_rows(rows, itemsizes, sub, vmem_limit)

    if n_elem % (sub * _LANE) == 0:
        # already layout-aligned: avoid an extra HBM pad pass; the ragged last
        # tile (if any) is handled by the in-kernel mask (free VPU filler).
        r_pad = rows
    else:
        # a pad copy is unavoidable anyway -> pad to a full tile multiple so
        # the kernel needs no masking.
        r_pad = _round_up(rows, tile_r)

    n_tiles = _cdiv(r_pad, tile_r)

    def to_slab(x):
        flat = jnp.ravel(x)
        if r_pad * _LANE != n_elem:
            flat = jnp.pad(flat, (0, r_pad * _LANE - n_elem))
        return flat.reshape(r_pad, _LANE)

    tgt = to_slab(target)
    preds = [to_slab(o) for o in outs]
    n_stages = len(preds)

    kernel = functools.partial(
        _sse_kernel, n_stages=n_stages, tile_r=tile_r, r_rows=r_pad)

    in_specs = [pl.BlockSpec((tile_r, _LANE), lambda k: (k, 0))
                for _ in range(n_stages + 1)]
    out_spec = pl.BlockSpec((1, n_stages, _SUB, _LANE),
                            lambda k: (k, 0, 0, 0))

    cost = pl.CostEstimate(
        flops=int(3 * n_stages * n_elem),
        transcendentals=0,
        bytes_accessed=int(sum(itemsizes) * n_elem
                           + n_tiles * n_stages * _SUB * _LANE * 4),
    )

    partials = pl.pallas_call(
        kernel,
        out_shape=jax.ShapeDtypeStruct(
            (n_tiles, n_stages, _SUB, _LANE), jnp.float32),
        grid_spec=pltpu.PrefetchScalarGridSpec(
            num_scalar_prefetch=0,
            grid=(n_tiles,),
            in_specs=in_specs,
            out_specs=out_spec,
        ),
        compiler_params=pltpu.CompilerParams(
            dimension_semantics=("parallel",),
            vmem_limit_bytes=vmem_limit,
        ),
        cost_estimate=cost,
    )(*preds, tgt)

    # sum of per-stage means == (total SSE over all stages) / n_elem
    return jnp.sum(partials) / jnp.float32(n_elem)


# ----------------------------------------------------------------------------
# MaximumLikelihoodLoss path summed over CPM stages
# ----------------------------------------------------------------------------
def _ml_kernel(*args, n_stages, tile_b, r_pad, n_bt):
    preds = args[:n_stages]
    tgt_ref = args[n_stages]
    out_ref = args[n_stages + 1]                      # (1, n_stages, 8, 128)
    m_ref, l_ref, sxt_ref, st_ref = args[n_stages + 2:]

    bt = pl.program_id(1)
    n_groups = (tile_b * r_pad) // _SUB

    @pl.when(bt == 0)
    def _():
        m_ref[...] = jnp.full_like(m_ref, _NEG_BIG)
        l_ref[...] = jnp.zeros_like(l_ref)
        sxt_ref[...] = jnp.zeros_like(sxt_ref)
        st_ref[...] = jnp.zeros_like(st_ref)

    # target slab: padded tail is 0 -> contributes nothing to the sums
    t3 = tgt_ref[...].astype(jnp.float32).reshape(n_groups, _SUB, _LANE)
    st_ref[...] += jnp.sum(t3, axis=0)                # VPU partial reduce

    for si in range(n_stages):
        # pred slab: padded tail filled with a huge negative -> exp() == 0
        x3 = preds[si][...].astype(jnp.float32).reshape(n_groups, _SUB, _LANE)
        # online logsumexp with (8,128)-shaped running state
        m_old = m_ref[si]
        m_new = jnp.maximum(m_old, jnp.max(x3, axis=0))
        alpha = jnp.exp(m_old - m_new)
        l_ref[si] = l_ref[si] * alpha + jnp.sum(jnp.exp(x3 - m_new[None]),
                                                axis=0)
        sxt_ref[si] += jnp.sum(x3 * t3, axis=0)
        m_ref[si] = m_new

    @pl.when(bt == n_bt - 1)
    def _():
        sum_t = jnp.sum(st_ref[...])                  # tiny (8,128) reduce
        for si in range(n_stages):
            m = m_ref[si]
            l = l_ref[si]
            mm = jnp.max(m)
            lse = mm + jnp.log(jnp.sum(l * jnp.exp(m - mm)))
            sum_xt = jnp.sum(sxt_ref[si])
            # -sum(log_softmax(x)*t)/sum(t) == -(sum(x*t) - lse*sum(t))/sum(t)
            ch_loss = -(sum_xt - lse * sum_t) / sum_t
            out_ref[0, si] = jnp.broadcast_to(ch_loss, (_SUB, _LANE))


def _pick_ml_tile_b(bb, r_pad, itemsizes, vmem_limit):
    # all (n_stages+1) inputs double-buffered; budget half of VMEM for blocks
    per_b_bytes = 2 * r_pad * _LANE * sum(itemsizes)
    budget = vmem_limit // 2
    max_b = max(1, budget // per_b_bytes)
    best = 1
    for d in range(1, bb + 1):           # largest divisor of bb that fits
        if bb % d == 0 and d <= max_b:
            best = d
    return best


def cpm_loss_maxlikelihood(outs, target):
    bb, cc, hh, ww = target.shape
    hw = hh * ww
    dtypes = [target.dtype] + [o.dtype for o in outs]
    itemsizes = [int(jnp.dtype(d).itemsize) for d in dtypes]
    sub = max(_sublane(d) for d in dtypes)
    vmem_limit = _vmem_limit_bytes()

    r = _cdiv(hw, _LANE)
    r_pad = max(_round_up(r, sub), sub)
    hw_pad = r_pad * _LANE

    def to_slab(x, pad_value):
        x = x.reshape(bb, cc, hw)
        if hw_pad != hw:
            x = jnp.pad(x, ((0, 0), (0, 0), (0, hw_pad - hw)),
                        constant_values=pad_value)
        return x.reshape(bb, cc, r_pad, _LANE)

    tgt = to_slab(target, 0.0)
    preds = [to_slab(o, _pad_neg_value(o.dtype)) for o in outs]
    n_stages = len(preds)

    tile_b = _pick_ml_tile_b(bb, r_pad, itemsizes, vmem_limit)
    n_bt = bb // tile_b

    kernel = functools.partial(
        _ml_kernel, n_stages=n_stages, tile_b=tile_b, r_pad=r_pad, n_bt=n_bt)

    # batch + whole HW folded into the block; grid = (C, B/tile_b); typically
    # tile_b == B so each channel is a single large-DMA grid step.
    blk = pl.BlockSpec((tile_b, 1, r_pad, _LANE), lambda c, bt: (bt, c, 0, 0))
    in_specs = [blk for _ in range(n_stages + 1)]
    out_spec = pl.BlockSpec((1, n_stages, _SUB, _LANE),
                            lambda c, bt: (c, 0, 0, 0))

    n_elem = bb * cc * hw
    cost = pl.CostEstimate(
        flops=int(8 * n_stages * n_elem),
        transcendentals=int(n_stages * n_elem),
        bytes_accessed=int(sum(itemsizes) * bb * cc * hw_pad
                           + cc * n_stages * _SUB * _LANE * 4),
    )

    ch_losses = pl.pallas_call(
        kernel,
        out_shape=jax.ShapeDtypeStruct(
            (cc, n_stages, _SUB, _LANE), jnp.float32),
        grid_spec=pltpu.PrefetchScalarGridSpec(
            num_scalar_prefetch=0,
            grid=(cc, n_bt),
            in_specs=in_specs,
            out_specs=out_spec,
            scratch_shapes=[
                pltpu.VMEM((n_stages, _SUB, _LANE), jnp.float32),  # running max
                pltpu.VMEM((n_stages, _SUB, _LANE), jnp.float32),  # running l
                pltpu.VMEM((n_stages, _SUB, _LANE), jnp.float32),  # sum(x*t)
                pltpu.VMEM((_SUB, _LANE), jnp.float32),            # sum(t)
            ],
        ),
        compiler_params=pltpu.CompilerParams(
            # C is the only parallel axis: the per-channel accumulators carry
            # across the inner batch-tile axis, which must stay "arbitrary".
            dimension_semantics=("parallel", "arbitrary"),
            vmem_limit_bytes=vmem_limit,
        ),
        cost_estimate=cost,
    )(*preds, tgt)

    # the per-(channel, stage) scalar was broadcast into the (8,128) slab
    return jnp.sum(ch_losses[:, :, 0, 0])


def cpm_loss(outs, target, is_maxlikelihood=False):
    if is_maxlikelihood:
        return cpm_loss_maxlikelihood(outs, target)
    return cpm_loss_mse(outs, target)


# ----------------------------------------------------------------------------
# Pure-JAX references (mirror the PyTorch semantics)
# ----------------------------------------------------------------------------
def _mse_ref(outs, target):
    return sum(jnp.mean((o - target) ** 2) for o in outs)


def _ml_ref_single(pred, target):
    c = pred.shape[1]
    p = jnp.transpose(pred, (1, 0, 2, 3)).reshape(c, -1)
    t = jnp.transpose(target, (1, 0, 2, 3)).reshape(c, -1)
    logp = jax.nn.log_softmax(p, axis=1)
    ch = -jnp.sum(logp * t, axis=1) / jnp.sum(t, axis=1)
    return jnp.sum(ch)


def _ml_ref(outs, target):
    return sum(_ml_ref_single(o, target) for o in outs)


# ----------------------------------------------------------------------------
if __name__ == "__main__":
    key = jax.random.PRNGKey(0)
    B, C, H, W = 2, 4, 16, 16
    n_stages = 3  # CPM produces a list of per-stage outputs

    k_outs, k_tgt, k_outs2, k_tgt2 = jax.random.split(key, 4)

    # --- default path: MSELoss summed over stages ---
    outs = [
        jax.random.normal(jax.random.fold_in(k_outs, i), (B, C, H, W),
                          dtype=jnp.float32)
        for i in range(n_stages)
    ]
    target = jax.random.normal(k_tgt, (B, C, H, W), dtype=jnp.float32)

    loss_mse = jax.block_until_ready(cpm_loss(outs, target,
                                              is_maxlikelihood=False))
    ref_mse = _mse_ref(outs, target)
    assert jnp.allclose(loss_mse, ref_mse, rtol=1e-5, atol=1e-5), (
        loss_mse, ref_mse)

    # --- maxlikelihood path (positive heatmap-like targets) ---
    outs_ml = [
        jax.random.normal(jax.random.fold_in(k_outs2, i), (B, C, H, W),
                          dtype=jnp.float32)
        for i in range(n_stages)
    ]
    target_ml = jax.random.uniform(k_tgt2, (B, C, H, W), dtype=jnp.float32,
                                   minval=0.0, maxval=1.0)

    loss_ml = jax.block_until_ready(cpm_loss(outs_ml, target_ml,
                                             is_maxlikelihood=True))
    ref_ml = _ml_ref(outs_ml, target_ml)
    assert jnp.allclose(loss_ml, ref_ml, rtol=1e-4, atol=1e-4), (
        loss_ml, ref_ml)

    print("KERNEL_OK")
</pallas_src>

<mosaic_0001>
module attributes {stable_mosaic.version = 11 : i64} {
  func.func @_sse_kernel(%arg0: i32, %arg1: memref<16x128xf32, #tpu.memory_space<vmem>>, %arg2: memref<16x128xf32, #tpu.memory_space<vmem>>, %arg3: memref<16x128xf32, #tpu.memory_space<vmem>>, %arg4: memref<16x128xf32, #tpu.memory_space<vmem>>, %arg5: memref<1x3x8x128xf32, #tpu.memory_space<vmem>>) attributes {dimension_semantics = [#tpu.dimension_semantics<parallel>], iteration_bounds = array<i64: 1>, scalar_prefetch = 0 : i64, scratch_operands = 0 : i64, tpu.core_type = #tpu.core_type<tc>, window_params = [{transform_indices = @transform_0, window_bounds = array<i64: 16, 128>}, {transform_indices = @transform_1, window_bounds = array<i64: 16, 128>}, {transform_indices = @transform_2, window_bounds = array<i64: 16, 128>}, {transform_indices = @transform_3, window_bounds = array<i64: 16, 128>}, {transform_indices = @transform_4, window_bounds = array<i64: 1, 3, 8, 128>}]} {
    %c0 = arith.constant 0 : index
    %c0_0 = arith.constant 0 : index
    %0 = vector.load %arg4[%c0, %c0_0] : memref<16x128xf32, #tpu.memory_space<vmem>>, vector<16x128xf32>
    %c0_1 = arith.constant 0 : index
    %c0_2 = arith.constant 0 : index
    %1 = vector.load %arg1[%c0_1, %c0_2] : memref<16x128xf32, #tpu.memory_space<vmem>>, vector<16x128xf32>
    %2 = arith.subf %1, %0 : vector<16x128xf32>
    %3 = arith.mulf %2, %2 : vector<16x128xf32>
    %4 = vector.shape_cast %3 : vector<16x128xf32> to vector<2x8x128xf32>
    %cst = arith.constant dense<0.000000e+00> : vector<8x128xf32>
    %5 = vector.multi_reduction <add>, %4, %cst [0] : vector<2x8x128xf32> to vector<8x128xf32>
    %c0_3 = arith.constant 0 : index
    %c0_4 = arith.constant 0 : index
    %c0_5 = arith.constant 0 : index
    %c0_6 = arith.constant 0 : index
    %6 = vector.load %arg5[%c0_3, %c0_4, %c0_5, %c0_6] : memref<1x3x8x128xf32, #tpu.memory_space<vmem>>, vector<1x1x8x128xf32>
    %7 = vector.shape_cast %6 : vector<1x1x8x128xf32> to vector<8x128xf32>
    %8 = vector.shape_cast %5 : vector<8x128xf32> to vector<1x1x8x128xf32>
    tpu.vector_store %arg5[%c0_3, %c0_4, %c0_5, %c0_6], %8 {strides = array<i32>} : memref<1x3x8x128xf32, #tpu.memory_space<vmem>>, vector<1x1x8x128xf32>,
    %c0_7 = arith.constant 0 : index
    %c0_8 = arith.constant 0 : index
    %9 = vector.load %arg2[%c0_7, %c0_8] : memref<16x128xf32, #tpu.memory_space<vmem>>, vector<16x128xf32>
    %10 = arith.subf %9, %0 : vector<16x128xf32>
    %11 = arith.mulf %10, %10 : vector<16x128xf32>
    %12 = vector.shape_cast %11 : vector<16x128xf32> to vector<2x8x128xf32>
    %cst_9 = arith.constant dense<0.000000e+00> : vector<8x128xf32>
    %13 = vector.multi_reduction <add>, %12, %cst_9 [0] : vector<2x8x128xf32> to vector<8x128xf32>
    %c0_10 = arith.constant 0 : index
    %c1 = arith.constant 1 : index
    %c0_11 = arith.constant 0 : index
    %c0_12 = arith.constant 0 : index
    %14 = vector.load %arg5[%c0_10, %c1, %c0_11, %c0_12] : memref<1x3x8x128xf32, #tpu.memory_space<vmem>>, vector<1x1x8x128xf32>
    %15 = vector.shape_cast %14 : vector<1x1x8x128xf32> to vector<8x128xf32>
    %16 = vector.shape_cast %13 : vector<8x128xf32> to vector<1x1x8x128xf32>
    tpu.vector_store %arg5[%c0_10, %c1, %c0_11, %c0_12], %16 {strides = array<i32>} : memref<1x3x8x128xf32, #tpu.memory_space<vmem>>, vector<1x1x8x128xf32>,
    %c0_13 = arith.constant 0 : index
    %c0_14 = arith.constant 0 : index
    %17 = vector.load %arg3[%c0_13, %c0_14] : memref<16x128xf32, #tpu.memory_space<vmem>>, vector<16x128xf32>
    %18 = arith.subf %17, %0 : vector<16x128xf32>
    %19 = arith.mulf %18, %18 : vector<16x128xf32>
    %20 = vector.shape_cast %19 : vector<16x128xf32> to vector<2x8x128xf32>
    %cst_15 = arith.constant dense<0.000000e+00> : vector<8x128xf32>
    %21 = vector.multi_reduction <add>, %20, %cst_15 [0] : vector<2x8x128xf32> to vector<8x128xf32>
    %c0_16 = arith.constant 0 : index
    %c2 = arith.constant 2 : index
    %c0_17 = arith.constant 0 : index
    %c0_18 = arith.constant 0 : index
    %22 = vector.load %arg5[%c0_16, %c2, %c0_17, %c0_18] : memref<1x3x8x128xf32, #tpu.memory_space<vmem>>, vector<1x1x8x128xf32>
    %23 = vector.shape_cast %22 : vector<1x1x8x128xf32> to vector<8x128xf32>
    %24 = vector.shape_cast %21 : vector<8x128xf32> to vector<1x1x8x128xf32>
    tpu.vector_store %arg5[%c0_16, %c2, %c0_17, %c0_18], %24 {strides = array<i32>} : memref<1x3x8x128xf32, #tpu.memory_space<vmem>>, vector<1x1x8x128xf32>,
    return
  }
  func.func @transform_0(%arg0: i32) -> (i32, i32) {
    %c0_i32 = arith.constant 0 : i32
    %c0_i32_0 = arith.constant 0 : i32
    return %arg0, %c0_i32 : i32, i32
  }
  func.func @transform_1(%arg0: i32) -> (i32, i32) {
    %c0_i32 = arith.constant 0 : i32
    %c0_i32_0 = arith.constant 0 : i32
    return %arg0, %c0_i32 : i32, i32
  }
  func.func @transform_2(%arg0: i32) -> (i32, i32) {
    %c0_i32 = arith.constant 0 : i32
    %c0_i32_0 = arith.constant 0 : i32
    return %arg0, %c0_i32 : i32, i32
  }
  func.func @transform_3(%arg0: i32) -> (i32, i32) {
    %c0_i32 = arith.constant 0 : i32
    %c0_i32_0 = arith.constant 0 : i32
    return %arg0, %c0_i32 : i32, i32
  }
  func.func @transform_4(%arg0: i32) -> (i32, i32, i32, i32) {
    %c0_i32 = arith.constant 0 : i32
    %c0_i32_0 = arith.constant 0 : i32
    %c0_i32_1 = arith.constant 0 : i32
    %c0_i32_2 = arith.constant 0 : i32
    return %arg0, %c0_i32, %c0_i32_0, %c0_i32_1 : i32, i32, i32, i32
  }
}

</mosaic_0001>

<llo_original>
// kernel: tpu_custom_call.1
$region0: #{tpu_custom_call.1}
  #allocation0 [shape = 'u32[]', space=smem, size = 0x4, offset = 0x4, fixed_abs, tag = 'smem constant byte address 0x4 - core index']
  #allocation1 [shape = 'u32[144,128]{1,0:T(1,128)}', space=vmem, size = 0x12000, scoped, tag = 'internal scratch']
  %s0 = inlined_call_operand.hbm [shape: f32[16,128], index: 0, kind: input, shape index: {}]
  %s1 = inlined_call_operand.hbm [shape: f32[16,128], index: 1, kind: input, shape index: {}]
  %s2 = inlined_call_operand.hbm [shape: f32[16,128], index: 2, kind: input, shape index: {}]
  %s3 = inlined_call_operand.hbm [shape: f32[16,128], index: 3, kind: input, shape index: {}]
  %s4 = inlined_call_operand.hbm [shape: f32[1,3,8,128], index: 4, kind: output, shape index: {}]
  %s5 = sld [smem:[#allocation0]]
  $region42: #{tpu_custom_call.1} parent=0
    _
  %s7 = ssub.s32 1, %s5
  %s8 = scalar_select 0, %s7, %s5
  $region1: #{tpu_custom_call.1} parent=0
    #allocation2 [shape = 'u8[8192]{0}', space=vmem, size = 0x2000, scoped, tag = 'input window, operand 0, single buffered']
    #allocation3 [shape = 's32[1]{0}', space=sflag, size = 0x4, scoped, tag = 'scoped memory for tpu_custom_call.1']
    #allocation4 [shape = 's32[1]{0}', space=sflag, size = 0x4, scoped, tag = 'scoped memory for tpu_custom_call.1']
    #allocation5 [shape = 'u8[8192]{0}', space=vmem, size = 0x2000, scoped, tag = 'input window, operand 1, single buffered']
    #allocation6 [shape = 's32[1]{0}', space=sflag, size = 0x4, scoped, tag = 'scoped memory for tpu_custom_call.1']
    #allocation7 [shape = 'u8[8192]{0}', space=vmem, size = 0x2000, scoped, tag = 'input window, operand 2, single buffered']
    #allocation8 [shape = 'u8[8192]{0}', space=vmem, size = 0x2000, scoped, tag = 'input window, operand 3, single buffered']
    #allocation9 [shape = 's32[1]{0}', space=sflag, size = 0x4, scoped, tag = 'scoped memory for tpu_custom_call.1']
    #allocation10 [shape = 'u8[12288]{0}', space=vmem, size = 0x3000, scoped, tag = 'output window, operand 0, single buffered']
    %9 = vsyncpa [#allocation3], 0
    %10 = vsyncpa [#allocation6], 0
    %11 = vsyncpa [#allocation9], 0
    %12 = vsyncpa [#allocation4], 0
    // Predicated region
    $region2: #{tpu_custom_call.1} parent=1 // pred_check
      _
    $region3: #{tpu_custom_call.1} parent=1 // pred_check_branch
      %14 = sbr.rel (0) target = $region5
    $region4: #{tpu_custom_call.1} parent=1 // pred_region
      %s16 = ssub.s32 256, 256
      %17 = vsyncadd [#allocation3], %s16
      %s18 = sshll.u32 [#allocation2], 4
      %s19 = int_to_ptr.vmem [resolvable:$true] %s18
      %24 = dma.hbm_to_vmem [thread:$0]  %s0, 256, %s19, [#allocation3], 128, 128, 8
    $region5: #{tpu_custom_call.1} parent=1 // pred_fallthru
      _
    // Predicated region
    $region6: #{tpu_custom_call.1} parent=1 // pred_check
      _
    $region7: #{tpu_custom_call.1} parent=1 // pred_check_branch
      %26 = sbr.rel (0) target = $region9
    $region8: #{tpu_custom_call.1} parent=1 // pred_region
      %s28 = ssub.s32 256, 256
      %29 = vsyncadd [#allocation6], %s28
      %s30 = sshll.u32 [#allocation5], 4
      %s31 = int_to_ptr.vmem [resolvable:$true] %s30
      %36 = dma.hbm_to_vmem [thread:$0]  %s1, 256, %s31, [#allocation6], 128, 128, 8
    $region9: #{tpu_custom_call.1} parent=1 // pred_fallthru
      _
    // Predicated region
    $region10: #{tpu_custom_call.1} parent=1 // pred_check
      _
    $region11: #{tpu_custom_call.1} parent=1 // pred_check_branch
      %38 = sbr.rel (0) target = $region13
    $region12: #{tpu_custom_call.1} parent=1 // pred_region
      %s40 = ssub.s32 256, 256
      %41 = vsyncadd [#allocation6], %s40
      %s42 = sshll.u32 [#allocation7], 4
      %s43 = int_to_ptr.vmem [resolvable:$true] %s42
      %48 = dma.hbm_to_vmem [thread:$0]  %s2, 256, %s43, [#allocation6], 128, 128, 8
    $region13: #{tpu_custom_call.1} parent=1 // pred_fallthru
      _
    // Predicated region
    $region14: #{tpu_custom_call.1} parent=1 // pred_check
      _
    $region15: #{tpu_custom_call.1} parent=1 // pred_check_branch
      %50 = sbr.rel (0) target = $region17
    $region16: #{tpu_custom_call.1} parent=1 // pred_region
      %s52 = ssub.s32 256, 256
      %53 = vsyncadd [#allocation9], %s52
      %s54 = sshll.u32 [#allocation8], 4
      %s55 = int_to_ptr.vmem [resolvable:$true] %s54
      %60 = dma.hbm_to_vmem [thread:$0]  %s3, 256, %s55, [#allocation9], 128, 128, 8
    $region17: #{tpu_custom_call.1} parent=1 // pred_fallthru
      _
    // Predicated region
    $region18: #{tpu_custom_call.1} parent=1 // pred_check
      _
    $region19: #{tpu_custom_call.1} parent=1 // pred_check_branch
      %62 = sbr.rel (0) target = $region21
    $region20: #{tpu_custom_call.1} parent=1 // pred_region
      %63 = dma.done [#allocation3], 256
    $region21: #{tpu_custom_call.1} parent=1 // pred_fallthru
      _
    // Predicated region
    $region22: #{tpu_custom_call.1} parent=1 // pred_check
      _
    $region23: #{tpu_custom_call.1} parent=1 // pred_check_branch
      %65 = sbr.rel (0) target = $region25
    $region24: #{tpu_custom_call.1} parent=1 // pred_region
      %66 = dma.done [#allocation6], 256
    $region25: #{tpu_custom_call.1} parent=1 // pred_fallthru
      _
    // Predicated region
    $region26: #{tpu_custom_call.1} parent=1 // pred_check
      _
    $region27: #{tpu_custom_call.1} parent=1 // pred_check_branch
      %68 = sbr.rel (0) target = $region29
    $region28: #{tpu_custom_call.1} parent=1 // pred_region
      %69 = dma.done [#allocation6], 256
    $region29: #{tpu_custom_call.1} parent=1 // pred_fallthru
      _
    // Predicated region
    $region30: #{tpu_custom_call.1} parent=1 // pred_check
      _
    $region31: #{tpu_custom_call.1} parent=1 // pred_check_branch
      %71 = sbr.rel (0) target = $region33
    $region32: #{tpu_custom_call.1} parent=1 // pred_region
      %72 = dma.done [#allocation9], 256
    $region33: #{tpu_custom_call.1} parent=1 // pred_fallthru
      _
    %v73 = vld [vmem:[#allocation8] sm:$0xff]
    %v74 = vld [vmem:[#allocation8 + $0x8] sm:$0xff]
    %v75 = vld [vmem:[#allocation2] sm:$0xff]
    %v76 = vld [vmem:[#allocation2 + $0x8] sm:$0xff]
    %v77 = vsub.f32 %v75, %v73
    %v78 = vsub.f32 %v76, %v74
    %v79 = vmul.f32 %v77, %v77
    %v80 = vmul.f32 %v78, %v78
    %v81 = vadd.f32 %v79, %v80
    %82 = vst [vmem:[#allocation10] sm:$0xff] %v81
    %v83 = vld [vmem:[#allocation5] sm:$0xff]
    %v84 = vld [vmem:[#allocation5 + $0x8] sm:$0xff]
    %v85 = vsub.f32 %v83, %v73
    %v86 = vsub.f32 %v84, %v74
    %v87 = vmul.f32 %v85, %v85
    %v88 = vmul.f32 %v86, %v86
    %v89 = vadd.f32 %v87, %v88
    %s90 = scalar_lea.vmem [#allocation10], 8
    %91 = vst [vmem:[%s90] sm:$0xff] %v89
    %v92 = vld [vmem:[#allocation7] sm:$0xff]
    %v93 = vld [vmem:[#allocation7 + $0x8] sm:$0xff]
    %v94 = vsub.f32 %v92, %v73
    %v95 = vsub.f32 %v93, %v74
    %v96 = vmul.f32 %v94, %v94
    %v97 = vmul.f32 %v95, %v95
    %v98 = vadd.f32 %v96, %v97
    %s99 = scalar_lea.vmem [#allocation10], 16
    %100 = vst [vmem:[%s99] sm:$0xff] %v98
    // Predicated region
    $region34: #{tpu_custom_call.1} parent=1 // pred_check
      _
    $region35: #{tpu_custom_call.1} parent=1 // pred_check_branch
      %102 = sbr.rel (0) target = $region37
    $region36: #{tpu_custom_call.1} parent=1 // pred_region
      %s104 = ssub.s32 384, 384
      %105 = vsyncadd [#allocation4], %s104
      %s106 = sshll.u32 [#allocation10], 4
      %s107 = int_to_ptr.vmem [resolvable:$true] %s106
      %112 = dma.vmem_to_hbm [thread:$0]  %s107, 384, %s4, [#allocation4], 128, 128, 8
    $region37: #{tpu_custom_call.1} parent=1 // pred_fallthru
      _
    // Predicated region
    $region38: #{tpu_custom_call.1} parent=1 // pred_check
      _
    $region39: #{tpu_custom_call.1} parent=1 // pred_check_branch
      %114 = sbr.rel (0) target = $region41
    $region40: #{tpu_custom_call.1} parent=1 // pred_region
      %115 = dma.done [#allocation4], 384
    $region41: #{tpu_custom_call.1} parent=1 // pred_fallthru
      _
    %116 = vsyncpa [#allocation3], 1
    %117 = vsyncpa [#allocation6], 1
    %118 = vsyncpa [#allocation9], 1
    %119 = vsyncpa [#allocation4], 1

</llo_original>
